<compile_context>
chip_gen: v7x
topology: tpu7x:2x2x1
jax: 0.10.0
libtpu: 0.0.40
codegen_flags: <defaults>
</compile_context>

<pallas_src>
import functools
import math

import jax
import jax.numpy as jnp
from jax.experimental import pallas as pl
from jax.experimental.pallas import tpu as pltpu

W_DIM = 128           # latent dimension (matches the PyTorch spec)
RGB = 3               # ToRGB output channels
LRELU_SLOPE = 0.2


# --------------------------- packed parameter layout ---------------------------

def _align8(n):
    return (n + 7) & ~7


def _packed_layout(w_dim, cout):
    """Row offsets inside the single packed parameter buffer (lanes = Cin).

      rows [0, w_dim)              : w_style_scaled.T        (W_DIM, Cin)
      rows [bst_off, +1)           : b_style                 (1, Cin)
      rows [wrgb_off, +cout)       : w_rgb_scaled            (Cout, Cin)
      rows [brgb_off, +cout)       : b_rgb, lane-replicated  (Cout, Cin)
    Sections are 8-row aligned so every in-kernel slice starts on a sublane tile.
    """
    bst_off = _align8(w_dim)
    wrgb_off = bst_off + _align8(1)
    brgb_off = wrgb_off + _align8(cout)
    total = brgb_off + _align8(cout)
    return bst_off, wrgb_off, brgb_off, total


# ------------------------------- Pallas kernel --------------------------------

def _to_rgb_kernel(x_ref, wlat_ref, p_ref, o_ref, wmod_ref, *,
                   bst_off, wrgb_off, brgb_off):
    """Fused ToRGB tile: LeakyReLU( (w_rgb ⊙ style_b) @ x_tile_b + b_rgb ).

    x_ref    : (B, Cin, T)     f32  activation tile, spatial on the lane axis
    wlat_ref : (B, W_DIM)      f32  latent w (grid-invariant, stays resident)
    p_ref    : (PROWS, Cin)    f32  packed params (one DMA)
    o_ref    : (B, Cout, T)    f32  output tile (lane-dense, unmasked stores)
    wmod_ref : (B, Cout, Cin)  f32  scratch: per-sample modulated 1x1 weight
    """
    b_sz = x_ref.shape[0]
    cout = o_ref.shape[1]
    w_dim = wlat_ref.shape[1]

    # Style path hoisted out of the spatial-tile loop.  Guarded on the INNER
    # grid index so it re-runs at the start of each outer (core-parallel)
    # slice -> correct when the outer axis is split across v7x's 2 TCs.
    @pl.when(pl.program_id(1) == 0)
    def _():
        wst = p_ref[pl.ds(0, w_dim), :]                          # (W_DIM, Cin)
        bst = p_ref[pl.ds(bst_off, 1), :]                        # (1, Cin)
        s = jnp.dot(wlat_ref[...], wst,
                    preferred_element_type=jnp.float32) + bst    # (B, Cin)
        wrgb = p_ref[pl.ds(wrgb_off, cout), :]                   # (Cout, Cin)
        for b in range(b_sz):
            # demodulate=False: per-sample modulation of the tiny 1x1 weight.
            # Lane-aligned (1, Cin) broadcast; no relayout, no per-step
            # (B, Cout, Cin) materialization.
            wmod_ref[b] = wrgb * s[b:b + 1, :]

    # Steady state per spatial tile: load -> 2D MXU dot -> bias -> LeakyReLU -> store.
    brgb = p_ref[pl.ds(brgb_off, cout), :][:, :1]                # (Cout, 1)
    for b in range(b_sz):                                        # B small & static
        y = jnp.dot(wmod_ref[b], x_ref[b],
                    preferred_element_type=jnp.float32)          # (Cout, T) f32
        y = y + brgb
        o_ref[b] = jnp.where(y >= 0.0, y, LRELU_SLOPE * y)


# ---------------------------------- wrapper ------------------------------------

def _pick_spatial_tile(hw):
    """Lane-dense tile along H*W (multiple of 128); prefer >= 2 tiles so the
    pipeline double-buffers and the parallel axis can split across cores."""
    for t in (2048, 1024, 512, 256, 128):
        if hw % t == 0 and hw // t >= 2:
            return t
    for t in (2048, 1024, 512, 256, 128):
        if hw % t == 0:
            return t
    # TODO(synk): pad H*W up to a multiple of 128 for odd spatial sizes.
    return hw


@jax.jit
def to_rgb_apply(packed_params, x, w_lat):
    """x: (B, Cin, H, W) f32 NCHW; w_lat: (B, W_DIM) f32. Returns (B, 3, H, W)."""
    B, Cin, H, W = x.shape
    hw = H * W
    cout = RGB
    w_dim = w_lat.shape[1]
    bst_off, wrgb_off, brgb_off, prows = _packed_layout(w_dim, cout)
    assert packed_params.shape == (prows, Cin), packed_params.shape

    t = _pick_spatial_tile(hw)
    n_tiles = hw // t
    n_outer = 2 if n_tiles % 2 == 0 else 1      # 2-way spatial split for v7x's 2 TCs
    n_inner = n_tiles // n_outer

    x_flat = x.reshape(B, Cin, hw)              # lane-dense view: layout plumbing only

    kernel = functools.partial(_to_rgb_kernel, bst_off=bst_off,
                               wrgb_off=wrgb_off, brgb_off=brgb_off)
    out = pl.pallas_call(
        kernel,
        out_shape=jax.ShapeDtypeStruct((B, cout, hw), jnp.float32),
        grid_spec=pltpu.PrefetchScalarGridSpec(
            num_scalar_prefetch=0,
            grid=(n_outer, n_inner),
            in_specs=[
                pl.BlockSpec((B, Cin, t), lambda i, j: (0, 0, i * n_inner + j)),
                pl.BlockSpec((B, w_dim), lambda i, j: (0, 0)),
                pl.BlockSpec((prows, Cin), lambda i, j: (0, 0)),
            ],
            out_specs=pl.BlockSpec((B, cout, t),
                                   lambda i, j: (0, 0, i * n_inner + j)),
            scratch_shapes=[pltpu.VMEM((B, cout, Cin), jnp.float32)],
        ),
        compiler_params=pltpu.CompilerParams(
            dimension_semantics=("parallel", "arbitrary")),
    )(x_flat, w_lat, packed_params)
    return out.reshape(B, cout, H, W)


# ----------------------------------- params ------------------------------------

def pack_to_rgb_params(w_style, b_style, w_rgb, b_rgb, w_dim=W_DIM):
    """Pack all (already equalized-lr-scaled) params into ONE Cin-lane buffer."""
    cin = w_style.shape[0]
    cout = w_rgb.shape[0]
    bst_off, wrgb_off, brgb_off, total = _packed_layout(w_dim, cout)
    p = jnp.zeros((total, cin), jnp.float32)
    p = p.at[0:w_dim, :].set(w_style.T)                               # (W_DIM, Cin)
    p = p.at[bst_off, :].set(b_style)                                 # (Cin,)
    p = p.at[wrgb_off:wrgb_off + cout, :].set(w_rgb)                  # (Cout, Cin)
    p = p.at[brgb_off:brgb_off + cout, :].set(
        jnp.broadcast_to(b_rgb[:, None], (cout, cin)))                # lane-replicated
    return p


def init_to_rgb_params(key, features, w_dim=W_DIM):
    """Mirror of the PyTorch ToRGB params; equalized-lr constants folded in once."""
    k_style, k_rgb = jax.random.split(key)
    c_style = 1.0 / math.sqrt(w_dim)
    c_rgb = 1.0 / math.sqrt(features * 1 * 1)                 # kernel_size = 1
    w_style = jax.random.normal(k_style, (features, w_dim), jnp.float32) * c_style
    b_style = jnp.ones((features,), jnp.float32)              # EqualizedLinear bias=1.0
    w_rgb = jax.random.normal(k_rgb, (RGB, features), jnp.float32) * c_rgb
    b_rgb = jnp.zeros((RGB,), jnp.float32)
    return pack_to_rgb_params(w_style, b_style, w_rgb, b_rgb, w_dim)


# ---------------------------------- reference -----------------------------------

def to_rgb_reference(packed_params, x, w_lat):
    """Pure-JAX f32 reference of the PyTorch forward (for a tolerance check)."""
    w_dim = w_lat.shape[1]
    bst_off, wrgb_off, brgb_off, _ = _packed_layout(w_dim, RGB)
    wst = packed_params[0:w_dim, :]                           # (W_DIM, Cin)
    bst = packed_params[bst_off, :]                           # (Cin,)
    wrgb = packed_params[wrgb_off:wrgb_off + RGB, :]          # (Cout, Cin)
    brgb = packed_params[brgb_off:brgb_off + RGB, 0]          # (Cout,)
    s = w_lat @ wst + bst                                     # (B, Cin)
    wmod = wrgb[None, :, :] * s[:, None, :]                   # (B, Cout, Cin)
    y = jnp.einsum("boc,bchw->bohw", wmod, x) + brgb[None, :, None, None]
    return jnp.where(y >= 0.0, y, LRELU_SLOPE * y)


# ------------------------------------- main -------------------------------------

if __name__ == "__main__":
    key = jax.random.PRNGKey(0)
    pkey, xkey, wkey = jax.random.split(key, 3)

    batch, features, res = 2, 32, 16
    packed = init_to_rgb_params(pkey, features)
    x = jax.random.normal(xkey, (batch, features, res, res), jnp.float32)
    w_lat = jax.random.normal(wkey, (batch, W_DIM), jnp.float32)

    rgb = jax.block_until_ready(to_rgb_apply(packed, x, w_lat))

    assert rgb.shape == (batch, RGB, res, res), rgb.shape
    assert bool(jnp.all(jnp.isfinite(rgb)))

    # Tolerance check vs f32 reference (kernel is pure f32 now).
    ref = to_rgb_reference(packed, x, w_lat)
    err = float(jnp.max(jnp.abs(rgb - ref)))
    assert err < 1e-3, f"max abs error {err}"

    print("KERNEL_OK")
</pallas_src>

<mosaic_0001>
module attributes {stable_mosaic.version = 11 : i64} {
  func.func @_to_rgb_kernel(%arg0: i32, %arg1: i32, %arg2: memref<2x32x128xf32, #tpu.memory_space<vmem>>, %arg3: memref<2x128xf32, #tpu.memory_space<vmem>>, %arg4: memref<152x32xf32, #tpu.memory_space<vmem>>, %arg5: memref<2x3x128xf32, #tpu.memory_space<vmem>>, %arg6: memref<2x3x32xf32, #tpu.memory_space<vmem>>) attributes {dimension_semantics = [#tpu.dimension_semantics<parallel>, #tpu.dimension_semantics<arbitrary>], iteration_bounds = array<i64: 2, 1>, scalar_prefetch = 0 : i64, scratch_operands = 1 : i64, tpu.core_type = #tpu.core_type<tc>, window_params = [{transform_indices = @transform_0, window_bounds = array<i64: 2, 32, 128>}, {pipeline_mode = #tpu.pipeline_mode<synchronous>, transform_indices = @transform_1, window_bounds = array<i64: 2, 128>}, {pipeline_mode = #tpu.pipeline_mode<synchronous>, transform_indices = @transform_2, window_bounds = array<i64: 152, 32>}, {transform_indices = @transform_3, window_bounds = array<i64: 2, 3, 128>}]} {
    %c0_i32 = arith.constant 0 : i32
    %0 = arith.cmpi eq, %arg1, %c0_i32 : i32
    %1 = arith.extui %0 : i1 to i32
    %c0_i32_0 = arith.constant 0 : i32
    %2 = arith.cmpi ne, %1, %c0_i32_0 : i32
    scf.if %2 {
      %c0_23 = arith.constant 0 : index
      %c0_24 = arith.constant 0 : index
      %35 = vector.load %arg4[%c0_23, %c0_24] : memref<152x32xf32, #tpu.memory_space<vmem>>, vector<128x32xf32>
      %c128 = arith.constant 128 : index
      %c0_25 = arith.constant 0 : index
      %36 = vector.load %arg4[%c128, %c0_25] : memref<152x32xf32, #tpu.memory_space<vmem>>, vector<1x32xf32>
      %c0_26 = arith.constant 0 : index
      %c0_27 = arith.constant 0 : index
      %37 = vector.load %arg3[%c0_26, %c0_27] : memref<2x128xf32, #tpu.memory_space<vmem>>, vector<2x128xf32>
      %cst_28 = arith.constant dense<0.000000e+00> : vector<2x32xf32>
      %38 = tpu.matmul %37, %35, %cst_28 {dimension_numbers = #tpu.dot_dimension_numbers<[1], [0], [0], [1], [0, 0, 1, 1], [], []>} : vector<2x128xf32>, vector<128x32xf32>, vector<2x32xf32> -> vector<2x32xf32>
      %39 = vector.broadcast %36 : vector<1x32xf32> to vector<2x32xf32>
      %40 = arith.addf %38, %39 : vector<2x32xf32>
      %c136 = arith.constant 136 : index
      %c0_29 = arith.constant 0 : index
      %41 = vector.load %arg4[%c136, %c0_29] : memref<152x32xf32, #tpu.memory_space<vmem>>, vector<3x32xf32>
      %42 = vector.extract_strided_slice %40 {offsets = [0, 0], sizes = [1, 32], strides = [1, 1]} : vector<2x32xf32> to vector<1x32xf32>
      %43 = vector.broadcast %42 : vector<1x32xf32> to vector<3x32xf32>
      %44 = arith.mulf %41, %43 : vector<3x32xf32>
      %c0_30 = arith.constant 0 : index
      %c0_31 = arith.constant 0 : index
      %c0_32 = arith.constant 0 : index
      %45 = vector.load %arg6[%c0_30, %c0_31, %c0_32] : memref<2x3x32xf32, #tpu.memory_space<vmem>>, vector<1x3x32xf32>
      %46 = vector.shape_cast %45 : vector<1x3x32xf32> to vector<3x32xf32>
      %47 = vector.shape_cast %44 : vector<3x32xf32> to vector<1x3x32xf32>
      tpu.vector_store %arg6[%c0_30, %c0_31, %c0_32], %47 {strides = array<i32>} : memref<2x3x32xf32, #tpu.memory_space<vmem>>, vector<1x3x32xf32>,
      %48 = vector.extract_strided_slice %40 {offsets = [1, 0], sizes = [1, 32], strides = [1, 1]} : vector<2x32xf32> to vector<1x32xf32>
      %49 = vector.broadcast %48 : vector<1x32xf32> to vector<3x32xf32>
      %50 = arith.mulf %41, %49 : vector<3x32xf32>
      %c1_33 = arith.constant 1 : index
      %c0_34 = arith.constant 0 : index
      %c0_35 = arith.constant 0 : index
      %51 = vector.load %arg6[%c1_33, %c0_34, %c0_35] : memref<2x3x32xf32, #tpu.memory_space<vmem>>, vector<1x3x32xf32>
      %52 = vector.shape_cast %51 : vector<1x3x32xf32> to vector<3x32xf32>
      %53 = vector.shape_cast %50 : vector<3x32xf32> to vector<1x3x32xf32>
      tpu.vector_store %arg6[%c1_33, %c0_34, %c0_35], %53 {strides = array<i32>} : memref<2x3x32xf32, #tpu.memory_space<vmem>>, vector<1x3x32xf32>,
    } else {
    }
    %c144 = arith.constant 144 : index
    %c0 = arith.constant 0 : index
    %3 = vector.load %arg4[%c144, %c0] : memref<152x32xf32, #tpu.memory_space<vmem>>, vector<3x32xf32>
    %4 = vector.extract_strided_slice %3 {offsets = [0, 0], sizes = [3, 1], strides = [1, 1]} : vector<3x32xf32> to vector<3x1xf32>
    %c0_1 = arith.constant 0 : index
    %c0_2 = arith.constant 0 : index
    %c0_3 = arith.constant 0 : index
    %5 = vector.load %arg6[%c0_1, %c0_2, %c0_3] : memref<2x3x32xf32, #tpu.memory_space<vmem>>, vector<1x3x32xf32>
    %6 = vector.shape_cast %5 : vector<1x3x32xf32> to vector<3x32xf32>
    %c0_4 = arith.constant 0 : index
    %c0_5 = arith.constant 0 : index
    %c0_6 = arith.constant 0 : index
    %7 = vector.load %arg2[%c0_4, %c0_5, %c0_6] : memref<2x32x128xf32, #tpu.memory_space<vmem>>, vector<1x32x128xf32>
    %8 = vector.shape_cast %7 : vector<1x32x128xf32> to vector<32x128xf32>
    %cst = arith.constant dense<0.000000e+00> : vector<3x128xf32>
    %9 = tpu.matmul %6, %8, %cst {dimension_numbers = #tpu.dot_dimension_numbers<[1], [0], [0], [1], [0, 0, 1, 1], [], []>} : vector<3x32xf32>, vector<32x128xf32>, vector<3x128xf32> -> vector<3x128xf32>
    %10 = vector.broadcast %4 : vector<3x1xf32> to vector<3x128xf32>
    %11 = arith.addf %9, %10 : vector<3x128xf32>
    %cst_7 = arith.constant 0.000000e+00 : f32
    %12 = vector.broadcast %cst_7 : f32 to vector<3x128xf32>
    %13 = arith.cmpf oge, %11, %12 : vector<3x128xf32>
    %cst_8 = arith.constant 2.000000e-01 : f32
    %14 = vector.broadcast %cst_8 : f32 to vector<3x128xf32>
    %15 = arith.mulf %14, %11 : vector<3x128xf32>
    %16 = arith.select %13, %11, %15 : vector<3x128xi1>, vector<3x128xf32>
    %c0_9 = arith.constant 0 : index
    %c0_10 = arith.constant 0 : index
    %c0_11 = arith.constant 0 : index
    %17 = vector.load %arg5[%c0_9, %c0_10, %c0_11] : memref<2x3x128xf32, #tpu.memory_space<vmem>>, vector<1x3x128xf32>
    %18 = vector.shape_cast %17 : vector<1x3x128xf32> to vector<3x128xf32>
    %19 = vector.shape_cast %16 : vector<3x128xf32> to vector<1x3x128xf32>
    tpu.vector_store %arg5[%c0_9, %c0_10, %c0_11], %19 {strides = array<i32>} : memref<2x3x128xf32, #tpu.memory_space<vmem>>, vector<1x3x128xf32>,
    %c1 = arith.constant 1 : index
    %c0_12 = arith.constant 0 : index
    %c0_13 = arith.constant 0 : index
    %20 = vector.load %arg6[%c1, %c0_12, %c0_13] : memref<2x3x32xf32, #tpu.memory_space<vmem>>, vector<1x3x32xf32>
    %21 = vector.shape_cast %20 : vector<1x3x32xf32> to vector<3x32xf32>
    %c1_14 = arith.constant 1 : index
    %c0_15 = arith.constant 0 : index
    %c0_16 = arith.constant 0 : index
    %22 = vector.load %arg2[%c1_14, %c0_15, %c0_16] : memref<2x32x128xf32, #tpu.memory_space<vmem>>, vector<1x32x128xf32>
    %23 = vector.shape_cast %22 : vector<1x32x128xf32> to vector<32x128xf32>
    %cst_17 = arith.constant dense<0.000000e+00> : vector<3x128xf32>
    %24 = tpu.matmul %21, %23, %cst_17 {dimension_numbers = #tpu.dot_dimension_numbers<[1], [0], [0], [1], [0, 0, 1, 1], [], []>} : vector<3x32xf32>, vector<32x128xf32>, vector<3x128xf32> -> vector<3x128xf32>
    %25 = vector.broadcast %4 : vector<3x1xf32> to vector<3x128xf32>
    %26 = arith.addf %24, %25 : vector<3x128xf32>
    %cst_18 = arith.constant 0.000000e+00 : f32
    %27 = vector.broadcast %cst_18 : f32 to vector<3x128xf32>
    %28 = arith.cmpf oge, %26, %27 : vector<3x128xf32>
    %cst_19 = arith.constant 2.000000e-01 : f32
    %29 = vector.broadcast %cst_19 : f32 to vector<3x128xf32>
    %30 = arith.mulf %29, %26 : vector<3x128xf32>
    %31 = arith.select %28, %26, %30 : vector<3x128xi1>, vector<3x128xf32>
    %c1_20 = arith.constant 1 : index
    %c0_21 = arith.constant 0 : index
    %c0_22 = arith.constant 0 : index
    %32 = vector.load %arg5[%c1_20, %c0_21, %c0_22] : memref<2x3x128xf32, #tpu.memory_space<vmem>>, vector<1x3x128xf32>
    %33 = vector.shape_cast %32 : vector<1x3x128xf32> to vector<3x128xf32>
    %34 = vector.shape_cast %31 : vector<3x128xf32> to vector<1x3x128xf32>
    tpu.vector_store %arg5[%c1_20, %c0_21, %c0_22], %34 {strides = array<i32>} : memref<2x3x128xf32, #tpu.memory_space<vmem>>, vector<1x3x128xf32>,
    return
  }
  func.func @transform_0(%arg0: i32, %arg1: i32) -> (i32, i32, i32) {
    %c1_i32 = arith.constant 1 : i32
    %0 = arith.muli %arg0, %c1_i32 : i32
    %1 = arith.addi %0, %arg1 : i32
    %c0_i32 = arith.constant 0 : i32
    %c0_i32_0 = arith.constant 0 : i32
    %c0_i32_1 = arith.constant 0 : i32
    return %c0_i32, %c0_i32_0, %1 : i32, i32, i32
  }
  func.func @transform_1(%arg0: i32, %arg1: i32) -> (i32, i32) {
    %c0_i32 = arith.constant 0 : i32
    %c0_i32_0 = arith.constant 0 : i32
    %c0_i32_1 = arith.constant 0 : i32
    return %c0_i32, %c0_i32_0 : i32, i32
  }
  func.func @transform_2(%arg0: i32, %arg1: i32) -> (i32, i32) {
    %c0_i32 = arith.constant 0 : i32
    %c0_i32_0 = arith.constant 0 : i32
    %c0_i32_1 = arith.constant 0 : i32
    return %c0_i32, %c0_i32_0 : i32, i32
  }
  func.func @transform_3(%arg0: i32, %arg1: i32) -> (i32, i32, i32) {
    %c1_i32 = arith.constant 1 : i32
    %0 = arith.muli %arg0, %c1_i32 : i32
    %1 = arith.addi %0, %arg1 : i32
    %c0_i32 = arith.constant 0 : i32
    %c0_i32_0 = arith.constant 0 : i32
    %c0_i32_1 = arith.constant 0 : i32
    return %c0_i32, %c0_i32_0, %1 : i32, i32, i32
  }
}

</mosaic_0001>

<llo_original>
// kernel: to_rgb_apply.1
$region0: #{to_rgb_apply.1}
  #allocation0 [shape = 'u32[]', space=smem, size = 0x4, offset = 0x4, fixed_abs, tag = 'smem constant byte address 0x4 - core index']
  #allocation1 [shape = 'u32[144,128]{1,0:T(1,128)}', space=vmem, size = 0x12000, scoped, tag = 'internal scratch']
  #allocation2 [shape = 'f32[2,3,32]{2,1,0:T(4,128)}', space=vmem, size = 0x1000, scoped, tag = 'scratch operand']
  %s0 = inlined_call_operand.vmem [shape: f32[2,32,256], index: 0, kind: input, shape index: {}]
  %s1 = inlined_call_operand.vmem [shape: f32[2,128], index: 1, kind: input, shape index: {}]
  %s2 = inlined_call_operand.vmem [shape: f32[152,32], index: 2, kind: input, shape index: {}]
  %s3 = inlined_call_operand.vmem [shape: f32[2,3,256], index: 3, kind: output, shape index: {}]
  %s4 = sld [smem:[#allocation0]]
  $region124: #{to_rgb_apply.1} parent=0
    _
  %s6 = ssub.s32 1, %s4
  %s7 = scalar_select 0, %s6, %s4
  $region1: #{to_rgb_apply.1} parent=0
    #allocation3 [shape = 'u8[65536]{0}', space=vmem, size = 0x10000, scoped, tag = 'input window, operand 0']
    #allocation4 [shape = 'u8[8192]{0}', space=vmem, size = 0x2000, scoped, tag = 'output window, operand 0']
    loop: start=0, step=1, limit=4
    $region2: #{to_rgb_apply.1} parent=1 // loop_pre_header
      _
    $region3: #{to_rgb_apply.1} parent=1 // loop_header
      %s9 = sphi 0, %s13
      %p10 = scmp.ge.s32.totalorder %s9, 4
      %s16 = sphi 0, %s28
      %s17 = sphi 0, %s24
      %s18 = sphi 0, %s16
      %s19 = sphi 0, %s17
      %s20 = sphi 0, %s18
      %s21 = sphi 0, %s19
      %s33 = sphi 0, %s35
      %s36 = sphi 0, %s33
      %s37 = sphi 0, %s36
      %s53 = sphi 0, %s37
      %s57 = sphi 0, %s57
      %s59 = sphi 0, %s57
      %s60 = sphi 0, %s59
      %s74 = sphi 0, %s60
      %s78 = sphi 0, %s78
      %s80 = sphi 0, %s78
      %s81 = sphi 0, %s80
      %s95 = sphi 0, %s81
      %s103 = sphi 0, %s105
      %s106 = sphi 0, %s103
      %s107 = sphi 0, %s106
      %s123 = sphi 0, %s107
    $region4: #{to_rgb_apply.1} parent=1 // loop_header_branch
      %12 = sbr.rel (%p10) target = $region8
    $region5: #{to_rgb_apply.1} parent=1 // loop_body
      %s14 = ssub.s32 %s9, 1
      %s15 = ssub.s32 %s9, 2
      %s22 = sadd.s32 1, %s17
      %p23 = scmp.ge.s32.totalorder %s22, 1
      %s24 = scalar_select %p23, 0, %s22
      %s25 = sadd.s32 1, %s16
      %s26 = scalar_select %p23, %s25, %s16
      %p27 = scmp.ge.s32.totalorder %s26, 2
      %s28 = scalar_select %p27, 0, %s26
      %s29 = sadd.s32 %s16, %s17
      %s30 = sadd.s32 %s28, %s24
      %s31 = ssub.s32 %s29, %s30
      %p32 = scmp.eq.s32.totalorder %s31, 0
      %s34 = sadd.s32 %s33, 1
      %s35 = scalar_select %p32, %s33, %s34
      %p38 = pneg %p32
      %p39 = scmp.eq.s32.totalorder %s9, 1
      %p40 = por %p38, %p39
      %p41 = scmp.ne.s32.totalorder %s33, %s36
      %p42 = scmp.eq.s32.totalorder %s9, 0
      %p43 = por %p41, %p42
      %p44 = scmp.ne.s32.totalorder %s33, %s36
      %p45 = scmp.eq.s32.totalorder %s14, 1
      %p46 = por %p44, %p45
      %p47 = scmp.ne.s32.totalorder %s36, %s37
      %p48 = scmp.eq.s32.totalorder %s14, 0
      %p49 = por %p47, %p48
      %p50 = scmp.ne.s32.totalorder %s36, %s37
      %p51 = scmp.eq.s32.totalorder %s15, 1
      %p52 = por %p50, %p51
      %p54 = scmp.ne.s32.totalorder %s37, %s53
      %p55 = scmp.eq.s32.totalorder %s15, 0
      %p56 = por %p54, %p55
      %s58 = sadd.s32 %s57, 1
      %p61 = scmp.eq.s32.totalorder %s9, 1
      %p62 = scmp.ne.s32.totalorder %s57, %s59
      %p63 = scmp.eq.s32.totalorder %s9, 0
      %p64 = por %p62, %p63
      %p65 = scmp.ne.s32.totalorder %s57, %s59
      %p66 = scmp.eq.s32.totalorder %s14, 1
      %p67 = por %p65, %p66
      %p68 = scmp.ne.s32.totalorder %s59, %s60
      %p69 = scmp.eq.s32.totalorder %s14, 0
      %p70 = por %p68, %p69
      %p71 = scmp.ne.s32.totalorder %s59, %s60
      %p72 = scmp.eq.s32.totalorder %s15, 1
      %p73 = por %p71, %p72
      %p75 = scmp.ne.s32.totalorder %s60, %s74
      %p76 = scmp.eq.s32.totalorder %s15, 0
      %p77 = por %p75, %p76
      %s79 = sadd.s32 %s78, 1
      %p82 = scmp.eq.s32.totalorder %s9, 1
      %p83 = scmp.ne.s32.totalorder %s78, %s80
      %p84 = scmp.eq.s32.totalorder %s9, 0
      %p85 = por %p83, %p84
      %p86 = scmp.ne.s32.totalorder %s78, %s80
      %p87 = scmp.eq.s32.totalorder %s14, 1
      %p88 = por %p86, %p87
      %p89 = scmp.ne.s32.totalorder %s80, %s81
      %p90 = scmp.eq.s32.totalorder %s14, 0
      %p91 = por %p89, %p90
      %p92 = scmp.ne.s32.totalorder %s80, %s81
      %p93 = scmp.eq.s32.totalorder %s15, 1
      %p94 = por %p92, %p93
      %p96 = scmp.ne.s32.totalorder %s81, %s95
      %p97 = scmp.eq.s32.totalorder %s15, 0
      %p98 = por %p96, %p97
      %s99 = sadd.s32 %s16, %s17
      %s100 = sadd.s32 %s28, %s24
      %s101 = ssub.s32 %s99, %s100
      %p102 = scmp.eq.s32.totalorder %s101, 0
      %s104 = sadd.s32 %s103, 1
      %s105 = scalar_select %p102, %s103, %s104
      %p108 = pneg %p102
      %p109 = scmp.eq.s32.totalorder %s9, 1
      %p110 = por %p108, %p109
      %p111 = scmp.ne.s32.totalorder %s103, %s106
      %p112 = scmp.eq.s32.totalorder %s9, 0
      %p113 = por %p111, %p112
      %p114 = scmp.ne.s32.totalorder %s103, %s106
      %p115 = scmp.eq.s32.totalorder %s14, 1
      %p116 = por %p114, %p115
      %p117 = scmp.ne.s32.totalorder %s106, %s107
      %p118 = scmp.eq.s32.totalorder %s14, 0
      %p119 = por %p117, %p118
      %p120 = scmp.ne.s32.totalorder %s106, %s107
      %p121 = scmp.eq.s32.totalorder %s15, 1
      %p122 = por %p120, %p121
      %p124 = scmp.ne.s32.totalorder %s107, %s123
      %p125 = scmp.eq.s32.totalorder %s15, 0
      %p126 = por %p124, %p125
      %p127 = scmp.le.s32.totalorder 1, %s9
      %p128 = scmp.lt.s32.totalorder %s9, 3
      %p129 = pnand %p127, %p128
      %p130 = pneg %p129
      // Predicated region
      $region9: #{to_rgb_apply.1} parent=5 // pred_check
        _
      $region10: #{to_rgb_apply.1} parent=5 // pred_check_branch
        %132 = sbr.rel (%p129) target = $region12
      $region11: #{to_rgb_apply.1} parent=5 // pred_region
        %s133 = ssub.s32 %s9, 1
        // Predicated region
        $region13: #{to_rgb_apply.1} parent=11 // pred_check
          %p134 = pneg %p70
        $region14: #{to_rgb_apply.1} parent=11 // pred_check_branch
          %136 = sbr.rel (%p134) target = $region16
        $region15: #{to_rgb_apply.1} parent=11 // pred_region
          _
        $region16: #{to_rgb_apply.1} parent=11 // pred_fallthru
          _
        // Predicated region
        $region17: #{to_rgb_apply.1} parent=11 // pred_check
          %p137 = pneg %p91
        $region18: #{to_rgb_apply.1} parent=11 // pred_check_branch
          %139 = sbr.rel (%p137) target = $region20
        $region19: #{to_rgb_apply.1} parent=11 // pred_region
          _
        $region20: #{to_rgb_apply.1} parent=11 // pred_fallthru
          _
      $region12: #{to_rgb_apply.1} parent=5 // pred_fallthru
        _
      %p140 = scmp.lt.s32.totalorder %s9, 2
      // Predicated region
      $region21: #{to_rgb_apply.1} parent=5 // pred_check
        %p141 = pneg %p140
      $region22: #{to_rgb_apply.1} parent=5 // pred_check_branch
        %143 = sbr.rel (%p141) target = $region24
      $region23: #{to_rgb_apply.1} parent=5 // pred_region
        // Predicated region
        $region25: #{to_rgb_apply.1} parent=23 // pred_check
          %p144 = pneg %p43
        $region26: #{to_rgb_apply.1} parent=23 // pred_check_branch
          %146 = sbr.rel (%p144) target = $region28
        $region27: #{to_rgb_apply.1} parent=23 // pred_region
          %s147 = sand.u32 %s33, 1
          %s148 = sand.u32 %s33, 1
          %s149 = smul.addr %s148, 64
          %s150 = scalar_lea.vmem [#allocation3], %s149
          %s151 = sadd.s32 %s16, %s17
          %s152 = smul.addr %s151, 8
          %s153 = scalar_lea.vmem %s0, %s152
          // Predicated region
          $region29: #{to_rgb_apply.1} parent=27 // pred_check
            _
          $region30: #{to_rgb_apply.1} parent=27 // pred_check_branch
            %155 = sbr.rel (0) target = $region32
          $region31: #{to_rgb_apply.1} parent=27 // pred_region
            // Predicated region
            $region33: #{to_rgb_apply.1} parent=31 // pred_check
              _
            $region34: #{to_rgb_apply.1} parent=31 // pred_check_branch
              %157 = sbr.rel (0) target = $region36
            $region35: #{to_rgb_apply.1} parent=31 // pred_region
              // Predicated region
              $region48: #{to_rgb_apply.1} parent=35 // pred_check
                _
              $region49: #{to_rgb_apply.1} parent=35 // pred_check_branch
                %186 = sbr.rel (0) target = $region51
              $region50: #{to_rgb_apply.1} parent=35 // pred_region
                loop: start=0, step=1, limit=1
                $region52: #{to_rgb_apply.1} parent=50 // loop_pre_header
                  _
                $region53: #{to_rgb_apply.1} parent=50 // loop_header
                  %s188 = sphi 0, %s192
                  %p189 = scmp.ge.s32.totalorder %s188, 1
                  %s193 = sphi %s153, %s153
                  %s194 = sphi %s150, %s150
                $region54: #{to_rgb_apply.1} parent=50 // loop_header_branch
                  %191 = sbr.rel (%p189) target = $region58
                $region55: #{to_rgb_apply.1} parent=50 // loop_body
                  %v195 = vld [vmem:[%s193] sm:$0xff]
                  %196 = vst [vmem:[%s194] sm:$0xff] %v195
                  %v197 = vld [vmem:[%s193 + $0x10] sm:$0xff]
                  %198 = vst [vmem:[%s194 + $0x8] sm:$0xff] %v197
                  %v199 = vld [vmem:[%s193 + $0x20] sm:$0xff]
                  %200 = vst [vmem:[%s194 + $0x10] sm:$0xff] %v199
                  %v201 = vld [vmem:[%s193 + $0x30] sm:$0xff]
                  %202 = vst [vmem:[%s194 + $0x18] sm:$0xff] %v201
                  %v203 = vld [vmem:[%s193 + $0x40] sm:$0xff]
                  %204 = vst [vmem:[%s194 + $0x20] sm:$0xff] %v203
                  %v205 = vld [vmem:[%s193 + $0x50] sm:$0xff]
                  %206 = vst [vmem:[%s194 + $0x28] sm:$0xff] %v205
                  %v207 = vld [vmem:[%s193 + $0x60] sm:$0xff]
                  %208 = vst [vmem:[%s194 + $0x30] sm:$0xff] %v207
                  %v209 = vld [vmem:[%s193 + $0x70] sm:$0xff]
                  %210 = vst [vmem:[%s194 + $0x38] sm:$0xff] %v209
                $region56: #{to_rgb_apply.1} parent=50 // loop_footer
                  %s192 = sadd.s32 1, %s188
                $region57: #{to_rgb_apply.1} parent=50 // loop_footer_branch
                  %187 = sbr.rel target = $region53
                $region58: #{to_rgb_apply.1} parent=50 // loop_exit
                  _
              $region51: #{to_rgb_apply.1} parent=35 // pred_fallthru
                _
              // Predicated region
              $region59: #{to_rgb_apply.1} parent=35 // pred_check
                _
              $region60: #{to_rgb_apply.1} parent=35 // pred_check_branch
                %212 = sbr.rel target = $region62
              $region61: #{to_rgb_apply.1} parent=35 // pred_region
                _
              $region62: #{to_rgb_apply.1} parent=35 // pred_fallthru
                _
            $region36: #{to_rgb_apply.1} parent=31 // pred_fallthru
              _
            // Predicated region
            $region37: #{to_rgb_apply.1} parent=31 // pred_check
              _
            $region38: #{to_rgb_apply.1} parent=31 // pred_check_branch
              %159 = sbr.rel target = $region40
            $region39: #{to_rgb_apply.1} parent=31 // pred_region
              loop: start=0, step=1, limit=1
              $region41: #{to_rgb_apply.1} parent=39 // loop_pre_header
                _
              $region42: #{to_rgb_apply.1} parent=39 // loop_header
                %s162 = sphi 0, %s166
                %p163 = scmp.ge.s32.totalorder %s162, 1
                %s167 = sphi %s153, %s153
                %s168 = sphi %s150, %s150
              $region43: #{to_rgb_apply.1} parent=39 // loop_header_branch
                %165 = sbr.rel (%p163) target = $region47
              $region44: #{to_rgb_apply.1} parent=39 // loop_body
                %v169 = vld [vmem:[%s167] sm:$0xff]
                %170 = vst [vmem:[%s168] sm:$0xff] %v169
                %v171 = vld [vmem:[%s167 + $0x10] sm:$0xff]
                %172 = vst [vmem:[%s168 + $0x8] sm:$0xff] %v171
                %v173 = vld [vmem:[%s167 + $0x20] sm:$0xff]
                %174 = vst [vmem:[%s168 + $0x10] sm:$0xff] %v173
                %v175 = vld [vmem:[%s167 + $0x30] sm:$0xff]
                %176 = vst [vmem:[%s168 + $0x18] sm:$0xff] %v175
                %v177 = vld [vmem:[%s167 + $0x40] sm:$0xff]
                %178 = vst [vmem:[%s168 + $0x20] sm:$0xff] %v177
                %v179 = vld [vmem:[%s167 + $0x50] sm:$0xff]
                %180 = vst [vmem:[%s168 + $0x28] sm:$0xff] %v179
                %v181 = vld [vmem:[%s167 + $0x60] sm:$0xff]
                %182 = vst [vmem:[%s168 + $0x30] sm:$0xff] %v181
                %v183 = vld [vmem:[%s167 + $0x70] sm:$0xff]
                %184 = vst [vmem:[%s168 + $0x38] sm:$0xff] %v183
              $region45: #{to_rgb_apply.1} parent=39 // loop_footer
                %s166 = sadd.s32 1, %s162
              $region46: #{to_rgb_apply.1} parent=39 // loop_footer_branch
                %161 = sbr.rel target = $region42
              $region47: #{to_rgb_apply.1} parent=39 // loop_exit
                _
            $region40: #{to_rgb_apply.1} parent=31 // pred_fallthru
              _
          $region32: #{to_rgb_apply.1} parent=27 // pred_fallthru
            _
          %213 = vnop
        $region28: #{to_rgb_apply.1} parent=23 // pred_fallthru
          _
      $region24: #{to_rgb_apply.1} parent=5 // pred_fallthru
        _
      %p214 = scmp.le.s32.totalorder 1, %s9
      %p215 = scmp.lt.s32.totalorder %s9, 3
      %p216 = pnand %p214, %p215
      %p217 = pneg %p216
      // Predicated region
      $region63: #{to_rgb_apply.1} parent=5 // pred_check
        _
      $region64: #{to_rgb_apply.1} parent=5 // pred_check_branch
        %219 = sbr.rel (%p216) target = $region66
      $region65: #{to_rgb_apply.1} parent=5 // pred_region
        %s220 = ssub.s32 %s9, 1
        %s221 = sand.u32 %s36, 1
        %s222 = sand.u32 %s36, 1
        %s223 = smul.addr %s222, 64
        %s224 = scalar_lea.vmem [#allocation3], %s223
        // Predicated region
        $region67: #{to_rgb_apply.1} parent=65 // pred_check
          %p225 = pneg %p49
        $region68: #{to_rgb_apply.1} parent=65 // pred_check_branch
          %227 = sbr.rel (%p225) target = $region70
        $region69: #{to_rgb_apply.1} parent=65 // pred_region
          _
        $region70: #{to_rgb_apply.1} parent=65 // pred_fallthru
          _
        %s228 = sand.u32 %s36, 1
        %s229 = sand.u32 %s36, 1
        %s230 = smul.addr %s229, 64
        %s231 = scalar_lea.vmem [#allocation3], %s230
        %p232 = pneg %p49
        %p233 = pneg %p46
        %p234 = pneg %p70
        %p235 = pneg %p67
        %p236 = pneg %p91
        %p237 = pneg %p88
        %p238 = pneg %p119
        %p239 = pneg %p116
        %s240 = sand.u32 %s106, 1
        %s241 = sand.u32 %s106, 1
        %s242 = smul.addr %s241, 8
        %s243 = scalar_lea.vmem [#allocation4], %s242
        %s244 = sadd.s32 %s18, %s19
        %s245 = sadd.s32 %s18, %s19
        %p246 = scmp.eq.s32.totalorder %s19, 0
        // Predicated region
        $region71: #{to_rgb_apply.1} parent=65 // pred_check
          %p247 = pneg %p246
        $region72: #{to_rgb_apply.1} parent=65 // pred_check_branch
          %249 = sbr.rel (%p247) target = $region74
        $region73: #{to_rgb_apply.1} parent=65 // pred_region
          %v250 = vld [vmem:[%s2] sm:$0xff]
          %v251 = vld [vmem:[%s2 + $0x8] sm:$0xff]
          %v252 = vld [vmem:[%s2 + $0x10] sm:$0xff]
          %v253 = vld [vmem:[%s2 + $0x18] sm:$0xff]
          %v254 = vld [vmem:[%s2 + $0x20] sm:$0xff]
          %v255 = vld [vmem:[%s2 + $0x28] sm:$0xff]
          %v256 = vld [vmem:[%s2 + $0x30] sm:$0xff]
          %v257 = vld [vmem:[%s2 + $0x38] sm:$0xff]
          %v258 = vld [vmem:[%s2 + $0x40] sm:$0xff]
          %v259 = vld [vmem:[%s2 + $0x48] sm:$0xff]
          %v260 = vld [vmem:[%s2 + $0x50] sm:$0xff]
          %v261 = vld [vmem:[%s2 + $0x58] sm:$0xff]
          %v262 = vld [vmem:[%s2 + $0x60] sm:$0xff]
          %v263 = vld [vmem:[%s2 + $0x68] sm:$0xff]
          %v264 = vld [vmem:[%s2 + $0x70] sm:$0xff]
          %v265 = vld [vmem:[%s2 + $0x78] sm:$0xff]
          %v266 = vld [vmem:[%s2 + $0x80] sm:$0x1]
          %v267 = vld [vmem:[%s1] sm:$0x3]
          %v268 = vlaneseq
          %v269 = vshrl.u32 %v268, 7
          %v270 = vsub.s32 0, %v269
          %v271 = vrot.slane %v266, %v270
          %272 = vmatprep.subr.mxu0 0.0
          %273 = vmatpush1.msra.mxu0 %v250
          %274 = vmatprep.subr.mxu0 0.0
          %275 = vmatpush1.msra.mxu0 %v251
          %276 = vmatprep.subr.mxu0 0.0
          %277 = vmatpush1.msra.mxu0 %v252
          %278 = vmatprep.subr.mxu0 0.0
          %279 = vmatpush1.msra.mxu0 %v253
          %280 = vmatprep.subr.mxu0 0.0
          %281 = vmatpush1.msra.mxu0 %v254
          %282 = vmatprep.subr.mxu0 0.0
          %283 = vmatpush1.msra.mxu0 %v255
          %284 = vmatprep.subr.mxu0 0.0
          %285 = vmatpush1.msra.mxu0 %v256
          %286 = vmatprep.subr.mxu0 0.0
          %287 = vmatpush1.msra.mxu0 %v257
          %288 = vmatprep.subr.mxu0 0.0
          %289 = vmatpush1.msra.mxu0 %v258
          %290 = vmatprep.subr.mxu0 0.0
          %291 = vmatpush1.msra.mxu0 %v259
          %292 = vmatprep.subr.mxu0 0.0
          %293 = vmatpush1.msra.mxu0 %v260
          %294 = vmatprep.subr.mxu0 0.0
          %295 = vmatpush1.msra.mxu0 %v261
          %296 = vmatprep.subr.mxu0 0.0
          %297 = vmatpush1.msra.mxu0 %v262
          %298 = vmatprep.subr.mxu0 0.0
          %299 = vmatpush1.msra.mxu0 %v263
          %300 = vmatprep.subr.mxu0 0.0
          %301 = vmatpush1.msra.mxu0 %v264
          %302 = vmatprep.subr.mxu0 0.0
          %303 = vmatpush1.msra.mxu0 %v265
          %304 = vmatprep.subr.mxu0 0.0
          %305 = vmatpush1.msra.mxu0 0.0
          %306 = vmatprep.subr.mxu0 0.0
          %307 = vmatpush1.msra.mxu0 0.0
          %308 = vmatprep.subr.mxu0 0.0
          %309 = vmatpush1.msra.mxu0 0.0
          %310 = vmatprep.subr.mxu0 0.0
          %311 = vmatpush1.msra.mxu0 0.0
          %312 = vmatprep.subr.mxu0 0.0
          %313 = vmatpush1.msra.mxu0 0.0
          %314 = vmatprep.subr.mxu0 0.0
          %315 = vmatpush1.msra.mxu0 0.0
          %316 = vmatprep.subr.mxu0 0.0
          %317 = vmatpush1.msra.mxu0 0.0
          %318 = vmatprep.subr.mxu0 0.0
          %319 = vmatpush1.msra.mxu0 0.0
          %320 = vmatprep.subr.mxu0 0.0
          %321 = vmatpush1.msra.mxu0 0.0
          %322 = vmatprep.subr.mxu0 0.0
          %323 = vmatpush1.msra.mxu0 0.0
          %324 = vmatprep.subr.mxu0 0.0
          %325 = vmatpush1.msra.mxu0 0.0
          %326 = vmatprep.subr.mxu0 0.0
          %327 = vmatpush1.msra.mxu0 0.0
          %328 = vmatprep.subr.mxu0 0.0
          %329 = vmatpush1.msra.mxu0 0.0
          %330 = vmatprep.subr.mxu0 0.0
          %331 = vmatpush1.msra.mxu0 0.0
          %332 = vmatprep.subr.mxu0 0.0
          %333 = vmatpush1.msra.mxu0 0.0
          %334 = vmatprep.subr.mxu0 0.0
          %335 = vmatpush1.msra.mxu0 0.0
          %336 = vmatprep.mubr.f32.mxu0 0.0
          %337 = vmatmul.mubr.f32.gmra.mrb[0].mxu0 %v267
          %v338 = vpop.f32.mrb[0].mxu0
          %v339 = vadd.f32 %v271, %v338
          %v340 = vpop.f32.mrb[0].mxu0
          %341 = vdwg.mxu0
          %v342 = vld [vmem:[%s2 + $0x88] sm:$0x7]
          %v343 = vlaneseq
          %v344 = vshrl.u32 %v343, 7
          %v345 = vsub.s32 0, %v344
          %v346 = vrot.slane %v339, %v345
          %v347 = vmul.f32 %v342, %v346
          %vm348 = vcmask 256000
          %349 = vst.msk [vmem:[#allocation2] sm:$0x7] %vm348, %v347
          %v350 = vlaneseq
          %v351 = vshrl.u32 %v350, 7
          %v352 = vsub.s32 1, %v351
          %v353 = vrot.slane %v339, %v352
          %v354 = vmul.f32 %v342, %v353
          %s355 = scalar_lea.vmem [#allocation2], 4
          %356 = vst.msk [vmem:[%s355] sm:$0x7] %vm348, %v354
        $region74: #{to_rgb_apply.1} parent=65 // pred_fallthru
          _
        %v357 = vld [vmem:[%s2 + $0x90] sm:$0x7]
        %v358 = vld [vmem:[#allocation2] sm:$0x7]
        %v359 = vld [vmem:[%s224] sm:$0xff]
        %v360 = vld [vmem:[%s224 + $0x8] sm:$0xff]
        %v361 = vld [vmem:[%s224 + $0x10] sm:$0xff]
        %v362 = vld [vmem:[%s224 + $0x18] sm:$0xff]
        %364 = vset.pattern.permute.xlu0 0
        %365 = vperm.xlu0 %364, %v357
        %v366 = vpop.permute.xlu0 %365
        %vm368 = vcmask 261120
        %v370 = vsel %vm368, %v358, 0
        %372 = vmatprep.subr.mxu0 0.0
        %373 = vmatpush1.msra.mxu0 %v359
        %374 = vmatprep.subr.mxu0 0.0
        %375 = vmatpush1.msra.mxu0 %v360
        %376 = vmatprep.subr.mxu0 0.0
        %377 = vmatpush1.msra.mxu0 %v361
        %378 = vmatprep.subr.mxu0 0.0
        %379 = vmatpush1.msra.mxu0 %v362
        %380 = vmatprep.subr.mxu0 0.0
        %381 = vmatpush1.msra.mxu0 0.0
        %382 = vmatprep.subr.mxu0 0.0
        %383 = vmatpush1.msra.mxu0 0.0
        %384 = vmatprep.subr.mxu0 0.0
        %385 = vmatpush1.msra.mxu0 0.0
        %386 = vmatprep.subr.mxu0 0.0
        %387 = vmatpush1.msra.mxu0 0.0
        %388 = vmatprep.subr.mxu0 0.0
        %389 = vmatpush1.msra.mxu0 0.0
        %390 = vmatprep.subr.mxu0 0.0
        %391 = vmatpush1.msra.mxu0 0.0
        %392 = vmatprep.subr.mxu0 0.0
        %393 = vmatpush1.msra.mxu0 0.0
        %394 = vmatprep.subr.mxu0 0.0
        %395 = vmatpush1.msra.mxu0 0.0
        %396 = vmatprep.subr.mxu0 0.0
        %397 = vmatpush1.msra.mxu0 0.0
        %398 = vmatprep.subr.mxu0 0.0
        %399 = vmatpush1.msra.mxu0 0.0
        %400 = vmatprep.subr.mxu0 0.0
        %401 = vmatpush1.msra.mxu0 0.0
        %402 = vmatprep.subr.mxu0 0.0
        %403 = vmatpush1.msra.mxu0 0.0
        %404 = vmatprep.subr.mxu0 0.0
        %405 = vmatpush1.msra.mxu0 0.0
        %406 = vmatprep.subr.mxu0 0.0
        %407 = vmatpush1.msra.mxu0 0.0
        %408 = vmatprep.subr.mxu0 0.0
        %409 = vmatpush1.msra.mxu0 0.0
        %410 = vmatprep.subr.mxu0 0.0
        %411 = vmatpush1.msra.mxu0 0.0
        %412 = vmatprep.subr.mxu0 0.0
        %413 = vmatpush1.msra.mxu0 0.0
        %414 = vmatprep.subr.mxu0 0.0
        %415 = vmatpush1.msra.mxu0 0.0
        %416 = vmatprep.subr.mxu0 0.0
        %417 = vmatpush1.msra.mxu0 0.0
        %418 = vmatprep.subr.mxu0 0.0
        %419 = vmatpush1.msra.mxu0 0.0
        %420 = vmatprep.subr.mxu0 0.0
        %421 = vmatpush1.msra.mxu0 0.0
        %422 = vmatprep.subr.mxu0 0.0
        %423 = vmatpush1.msra.mxu0 0.0
        %424 = vmatprep.subr.mxu0 0.0
        %425 = vmatpush1.msra.mxu0 0.0
        %426 = vmatprep.subr.mxu0 0.0
        %427 = vmatpush1.msra.mxu0 0.0
        %428 = vmatprep.subr.mxu0 0.0
        %429 = vmatpush1.msra.mxu0 0.0
        %430 = vmatprep.subr.mxu0 0.0
        %431 = vmatpush1.msra.mxu0 0.0
        %432 = vmatprep.subr.mxu0 0.0
        %433 = vmatpush1.msra.mxu0 0.0
        %434 = vmatprep.subr.mxu0 0.0
        %435 = vmatpush1.msra.mxu0 0.0
        %436 = vmatprep.mubr.f32.mxu0 0.0
        %437 = vmatmul.mubr.f32.gmra.mrb[0].mxu0 %v370
        %v438 = vpop.f32.mrb[0].mxu0
        %v439 = vadd.f32 %v366, %v438
        %v440 = vpop.f32.mrb[0].mxu0
        %441 = vdwg.mxu0
        %vm442 = vcmp.ge.f32.partialorder %v439, 0.0
        %v443 = vmul.f32 %v439, 0.2
        %v444 = vsel %vm442, %v439, %v443
        %445 = vst [vmem:[%s243] sm:$0x7] %v444
        %s446 = scalar_lea.vmem [#allocation2], 4
        %v447 = vld [vmem:[%s446] sm:$0x7]
        %s448 = scalar_lea.vmem %s224, 32 [#allocation3]
        %v449 = vld [vmem:[%s448] sm:$0xff]
        %v450 = vld [vmem:[%s448 + $0x8] sm:$0xff]
        %v451 = vld [vmem:[%s448 + $0x10] sm:$0xff]
        %v452 = vld [vmem:[%s448 + $0x18] sm:$0xff]
        %v454 = vsel %vm368, %v447, 0
        %456 = vmatprep.subr.mxu0 0.0
        %457 = vmatpush1.msra.mxu0 %v449
        %458 = vmatprep.subr.mxu0 0.0
        %459 = vmatpush1.msra.mxu0 %v450
        %460 = vmatprep.subr.mxu0 0.0
        %461 = vmatpush1.msra.mxu0 %v451
        %462 = vmatprep.subr.mxu0 0.0
        %463 = vmatpush1.msra.mxu0 %v452
        %464 = vmatprep.subr.mxu0 0.0
        %465 = vmatpush1.msra.mxu0 0.0
        %466 = vmatprep.subr.mxu0 0.0
        %467 = vmatpush1.msra.mxu0 0.0
        %468 = vmatprep.subr.mxu0 0.0
        %469 = vmatpush1.msra.mxu0 0.0
        %470 = vmatprep.subr.mxu0 0.0
        %471 = vmatpush1.msra.mxu0 0.0
        %472 = vmatprep.subr.mxu0 0.0
        %473 = vmatpush1.msra.mxu0 0.0
        %474 = vmatprep.subr.mxu0 0.0
        %475 = vmatpush1.msra.mxu0 0.0
        %476 = vmatprep.subr.mxu0 0.0
        %477 = vmatpush1.msra.mxu0 0.0
        %478 = vmatprep.subr.mxu0 0.0
        %479 = vmatpush1.msra.mxu0 0.0
        %480 = vmatprep.subr.mxu0 0.0
        %481 = vmatpush1.msra.mxu0 0.0
        %482 = vmatprep.subr.mxu0 0.0
        %483 = vmatpush1.msra.mxu0 0.0
        %484 = vmatprep.subr.mxu0 0.0
        %485 = vmatpush1.msra.mxu0 0.0
        %486 = vmatprep.subr.mxu0 0.0
        %487 = vmatpush1.msra.mxu0 0.0
        %488 = vmatprep.subr.mxu0 0.0
        %489 = vmatpush1.msra.mxu0 0.0
        %490 = vmatprep.subr.mxu0 0.0
        %491 = vmatpush1.msra.mxu0 0.0
        %492 = vmatprep.subr.mxu0 0.0
        %493 = vmatpush1.msra.mxu0 0.0
        %494 = vmatprep.subr.mxu0 0.0
        %495 = vmatpush1.msra.mxu0 0.0
        %496 = vmatprep.subr.mxu0 0.0
        %497 = vmatpush1.msra.mxu0 0.0
        %498 = vmatprep.subr.mxu0 0.0
        %499 = vmatpush1.msra.mxu0 0.0
        %500 = vmatprep.subr.mxu0 0.0
        %501 = vmatpush1.msra.mxu0 0.0
        %502 = vmatprep.subr.mxu0 0.0
        %503 = vmatpush1.msra.mxu0 0.0
        %504 = vmatprep.subr.mxu0 0.0
        %505 = vmatpush1.msra.mxu0 0.0
        %506 = vmatprep.subr.mxu0 0.0
        %507 = vmatpush1.msra.mxu0 0.0
        %508 = vmatprep.subr.mxu0 0.0
        %509 = vmatpush1.msra.mxu0 0.0
        %510 = vmatprep.subr.mxu0 0.0
        %511 = vmatpush1.msra.mxu0 0.0
        %512 = vmatprep.subr.mxu0 0.0
        %513 = vmatpush1.msra.mxu0 0.0
        %514 = vmatprep.subr.mxu0 0.0
        %515 = vmatpush1.msra.mxu0 0.0
        %516 = vmatprep.subr.mxu0 0.0
        %517 = vmatpush1.msra.mxu0 0.0
        %518 = vmatprep.subr.mxu0 0.0
        %519 = vmatpush1.msra.mxu0 0.0
        %520 = vmatprep.mubr.f32.mxu0 0.0
        %521 = vmatmul.mubr.f32.gmra.mrb[0].mxu0 %v454
        %v522 = vpop.f32.mrb[0].mxu0
        %v523 = vadd.f32 %v366, %v522
        %v524 = vpop.f32.mrb[0].mxu0
        %525 = vdwg.mxu0
        %vm526 = vcmp.ge.f32.partialorder %v523, 0.0
        %v527 = vmul.f32 %v523, 0.2
        %v528 = vsel %vm526, %v523, %v527
        %s529 = scalar_lea.vmem %s243, 4 [#allocation4]
        %530 = vst [vmem:[%s529] sm:$0x7] %v528
        %s531 = sand.u32 %s106, 1
        %s532 = sand.u32 %s106, 1
        %s533 = smul.addr %s532, 8
        %s534 = scalar_lea.vmem [#allocation4], %s533
        // Predicated region
        $region75: #{to_rgb_apply.1} parent=65 // pred_check
          %p535 = pneg %p116
        $region76: #{to_rgb_apply.1} parent=65 // pred_check_branch
          %537 = sbr.rel (%p535) target = $region78
        $region77: #{to_rgb_apply.1} parent=65 // pred_region
          %s538 = sadd.s32 %s18, %s19
          %s539 = smul.addr %s538, 4
          %s540 = scalar_lea.vmem %s3, %s539
          // Predicated region
          $region79: #{to_rgb_apply.1} parent=77 // pred_check
            _
          $region80: #{to_rgb_apply.1} parent=77 // pred_check_branch
            %542 = sbr.rel (0) target = $region82
          $region81: #{to_rgb_apply.1} parent=77 // pred_region
            // Predicated region
            $region83: #{to_rgb_apply.1} parent=81 // pred_check
              _
            $region84: #{to_rgb_apply.1} parent=81 // pred_check_branch
              %544 = sbr.rel target = $region86
            $region85: #{to_rgb_apply.1} parent=81 // pred_region
              // Predicated region
              $region98: #{to_rgb_apply.1} parent=85 // pred_check
                _
              $region99: #{to_rgb_apply.1} parent=85 // pred_check_branch
                %561 = sbr.rel (0) target = $region101
              $region100: #{to_rgb_apply.1} parent=85 // pred_region
                loop: start=0, step=1, limit=1
                $region102: #{to_rgb_apply.1} parent=100 // loop_pre_header
                  _
                $region103: #{to_rgb_apply.1} parent=100 // loop_header
                  %s563 = sphi 0, %s567
                  %p564 = scmp.ge.s32.totalorder %s563, 1
                  %s568 = sphi %s534, %s534
                  %s569 = sphi %s540, %s540
                $region104: #{to_rgb_apply.1} parent=100 // loop_header_branch
                  %566 = sbr.rel (%p564) target = $region108
                $region105: #{to_rgb_apply.1} parent=100 // loop_body
                  _
                $region106: #{to_rgb_apply.1} parent=100 // loop_footer
                  %s567 = sadd.s32 1, %s563
                $region107: #{to_rgb_apply.1} parent=100 // loop_footer_branch
                  %562 = sbr.rel target = $region103
                $region108: #{to_rgb_apply.1} parent=100 // loop_exit
                  _
                loop: start=0, step=1, limit=1
                $region109: #{to_rgb_apply.1} parent=100 // loop_pre_header
                  _
                $region110: #{to_rgb_apply.1} parent=100 // loop_header
                  %s572 = sphi 0, %s576
                  %p573 = scmp.ge.s32.totalorder %s572, 1
                  %s577 = sphi %s534, %s534
                  %s578 = sphi %s540, %s540
                $region111: #{to_rgb_apply.1} parent=100 // loop_header_branch
                  %575 = sbr.rel (%p573) target = $region115
                $region112: #{to_rgb_apply.1} parent=100 // loop_body
                  %v579 = vld [vmem:[%s577] sm:$0xf]
                  %580 = vst [vmem:[%s578] sm:$0xf] %v579
                  %v581 = vld [vmem:[%s577 + $0x4] sm:$0xf]
                  %582 = vst [vmem:[%s578 + $0x8] sm:$0xf] %v581
                $region113: #{to_rgb_apply.1} parent=100 // loop_footer
                  %s576 = sadd.s32 1, %s572
                $region114: #{to_rgb_apply.1} parent=100 // loop_footer_branch
                  %571 = sbr.rel target = $region110
                $region115: #{to_rgb_apply.1} parent=100 // loop_exit
                  _
              $region101: #{to_rgb_apply.1} parent=85 // pred_fallthru
                _
            $region86: #{to_rgb_apply.1} parent=81 // pred_fallthru
              _
            // Predicated region
            $region87: #{to_rgb_apply.1} parent=81 // pred_check
              _
            $region88: #{to_rgb_apply.1} parent=81 // pred_check_branch
              %546 = sbr.rel (0) target = $region90
            $region89: #{to_rgb_apply.1} parent=81 // pred_region
              loop: start=0, step=1, limit=1
              $region91: #{to_rgb_apply.1} parent=89 // loop_pre_header
                _
              $region92: #{to_rgb_apply.1} parent=89 // loop_header
                %s549 = sphi 0, %s553
                %p550 = scmp.ge.s32.totalorder %s549, 1
                %s554 = sphi %s534, %s534
                %s555 = sphi %s540, %s540
              $region93: #{to_rgb_apply.1} parent=89 // loop_header_branch
                %552 = sbr.rel (%p550) target = $region97
              $region94: #{to_rgb_apply.1} parent=89 // loop_body
                %v556 = vld [vmem:[%s554] sm:$0xf]
                %557 = vst [vmem:[%s555] sm:$0xf] %v556
                %v558 = vld [vmem:[%s554 + $0x4] sm:$0xf]
                %559 = vst [vmem:[%s555 + $0x8] sm:$0xf] %v558
              $region95: #{to_rgb_apply.1} parent=89 // loop_footer
                %s553 = sadd.s32 1, %s549
              $region96: #{to_rgb_apply.1} parent=89 // loop_footer_branch
                %548 = sbr.rel target = $region92
              $region97: #{to_rgb_apply.1} parent=89 // loop_exit
                _
            $region90: #{to_rgb_apply.1} parent=81 // pred_fallthru
              _
          $region82: #{to_rgb_apply.1} parent=77 // pred_fallthru
            _
          %583 = vnop
        $region78: #{to_rgb_apply.1} parent=65 // pred_fallthru
          _
      $region66: #{to_rgb_apply.1} parent=5 // pred_fallthru
        _
      %p584 = scmp.le.s32.totalorder 2, %s9
      // Predicated region
      $region116: #{to_rgb_apply.1} parent=5 // pred_check
        %p585 = pneg %p584
      $region117: #{to_rgb_apply.1} parent=5 // pred_check_branch
        %587 = sbr.rel (%p585) target = $region119
      $region118: #{to_rgb_apply.1} parent=5 // pred_region
        %s588 = ssub.s32 %s9, 2
        // Predicated region
        $region120: #{to_rgb_apply.1} parent=118 // pred_check
          %p589 = pneg %p122
        $region121: #{to_rgb_apply.1} parent=118 // pred_check_branch
          %591 = sbr.rel (%p589) target = $region123
        $region122: #{to_rgb_apply.1} parent=118 // pred_region
          %s592 = sand.u32 %s107, 1
          %s593 = sand.u32 %s107, 1
          %s594 = smul.addr %s593, 8
          %s595 = scalar_lea.vmem [#allocation4], %s594
        $region123: #{to_rgb_apply.1} parent=118 // pred_fallthru
          _
      $region119: #{to_rgb_apply.1} parent=5 // pred_fallthru
        _
    $region6: #{to_rgb_apply.1} parent=1 // loop_footer
      %s13 = sadd.s32 1, %s9
    $region7: #{to_rgb_apply.1} parent=1 // loop_footer_branch
      %8 = sbr.rel target = $region3
    $region8: #{to_rgb_apply.1} parent=1 // loop_exit
      _

</llo_original>
